<compile_context>
chip_gen: v5e
topology: v5e:2x2
jax: 0.10.0
libtpu: 0.0.40
codegen_flags: <defaults>
</compile_context>

<pallas_src>
import jax
import jax.numpy as jnp
from jax.experimental import pallas as pl
from jax.experimental.pallas import tpu as pltpu

_SUBLANE = 8  # f32 sublane alignment for the batch (second-to-last) dim


def _round_up(v, m):
    return ((v + m - 1) // m) * m


def _mlp_kernel(x_ref, w1_ref, b1_ref, w2_ref, b2_ref, o_ref):
    # x: (tb, N) f32 | w1: (N, H) | b1: (1, H) | w2: (H, N) | b2: (1, N).
    h = jnp.tanh(
        jnp.dot(x_ref[...], w1_ref[...], preferred_element_type=jnp.float32)
        + b1_ref[...])
    y = jnp.dot(h, w2_ref[...], preferred_element_type=jnp.float32) + b2_ref[...]
    o_ref[...] = jax.nn.sigmoid(y).astype(o_ref.dtype)


def centralized_net_l(x, w1, b1, w2, b2, *, tile_b=2048):
    """Forward pass. x: (B, N) f32; w1: (N, H); b1: (1, H); w2: (H, N); b2: (1, N)."""
    B, N = x.shape
    H = w1.shape[1]

    # Balanced, sublane-aligned batch tiles (avoids a mostly-empty last tile).
    grid_b = max(1, pl.cdiv(B, tile_b))
    tb = _round_up(pl.cdiv(B, grid_b), _SUBLANE)
    grid_b = pl.cdiv(B, tb)
    B_pad = grid_b * tb

    x_p = x if B_pad == B else jnp.pad(x, ((0, B_pad - B), (0, 0)))

    flops = 4 * B_pad * N * H                  # two matmuls
    transcendentals = B_pad * (H + N)          # tanh + sigmoid
    bytes_accessed = 4 * (x_p.size + w1.size + b1.size + w2.size + b2.size
                          + B_pad * N)

    out = pl.pallas_call(
        _mlp_kernel,
        out_shape=jax.ShapeDtypeStruct((B_pad, N), jnp.float32),
        grid=(grid_b,),
        in_specs=[
            pl.BlockSpec((tb, N), lambda i: (i, 0)),    # x: batch-tiled
            pl.BlockSpec((N, H), lambda i: (0, 0)),     # w1: resident in VMEM
            pl.BlockSpec((1, H), lambda i: (0, 0)),     # b1: resident
            pl.BlockSpec((H, N), lambda i: (0, 0)),     # w2: resident
            pl.BlockSpec((1, N), lambda i: (0, 0)),     # b2: resident
        ],
        out_specs=pl.BlockSpec((tb, N), lambda i: (i, 0)),
        compiler_params=pltpu.CompilerParams(
            dimension_semantics=("parallel",),          # megacore sharding
        ),
        cost_estimate=pl.CostEstimate(
            flops=flops,
            transcendentals=transcendentals,
            bytes_accessed=bytes_accessed,
        ),
    )(x_p, w1, b1, w2, b2)

    return out if B_pad == B else out[:B]


def init_params(key, N, hidden=64):
    """Deterministic init mimicking torch.nn.Linear default (uniform +-1/sqrt(fan_in)).

    Weights stored already transposed relative to PyTorch: (in, out)."""
    k1, k2, k3, k4 = jax.random.split(key, 4)
    bound1 = 1.0 / jnp.sqrt(N)
    bound2 = 1.0 / jnp.sqrt(hidden)
    w1 = jax.random.uniform(k1, (N, hidden), jnp.float32, -bound1, bound1)
    b1 = jax.random.uniform(k2, (1, hidden), jnp.float32, -bound1, bound1)
    w2 = jax.random.uniform(k3, (hidden, N), jnp.float32, -bound2, bound2)
    b2 = jax.random.uniform(k4, (1, N), jnp.float32, -bound2, bound2)
    return w1, b1, w2, b2


def reference(x, w1, b1, w2, b2):
    h = jnp.tanh(x @ w1 + b1)
    return jax.nn.sigmoid(h @ w2 + b2)


if __name__ == "__main__":
    N = 8          # number of agents (Linear input/output dim)
    key = jax.random.PRNGKey(0)
    kx, kp = jax.random.split(key)
    w1, b1, w2, b2 = init_params(kp, N)

    # Test 1: spec-sized batch (single grid tile, no batch padding).
    x = jax.random.normal(kx, (8, N), jnp.float32)
    out = jax.block_until_ready(centralized_net_l(x, w1, b1, w2, b2))
    ref = reference(x, w1, b1, w2, b2)
    assert out.shape == (8, N)
    assert jnp.allclose(out, ref, atol=2e-2, rtol=2e-2)

    # Test 2: larger, non-tile-multiple batch (exercises balanced tiling).
    xb = jax.random.normal(kx, (600, N), jnp.float32)
    outb = jax.block_until_ready(centralized_net_l(xb, w1, b1, w2, b2))
    refb = reference(xb, w1, b1, w2, b2)
    assert outb.shape == (600, N)
    assert jnp.allclose(outb, refb, atol=2e-2, rtol=2e-2)

    # Test 3: batch larger than one tile with small tile_b (multi-step grid,
    # batch padding path).
    xc = jax.random.normal(kx, (300, N), jnp.float32)
    outc = jax.block_until_ready(
        centralized_net_l(xc, w1, b1, w2, b2, tile_b=128))
    refc = reference(xc, w1, b1, w2, b2)
    assert outc.shape == (300, N)
    assert jnp.allclose(outc, refc, atol=2e-2, rtol=2e-2)

    print("KERNEL_OK")
</pallas_src>

<mosaic_0001>
module attributes {stable_mosaic.version = 11 : i64} {
  func.func @_mlp_kernel(%arg0: i32, %arg1: memref<8x8xf32, #tpu.memory_space<vmem>>, %arg2: memref<8x64xf32, #tpu.memory_space<vmem>>, %arg3: memref<1x64xf32, #tpu.memory_space<vmem>>, %arg4: memref<64x8xf32, #tpu.memory_space<vmem>>, %arg5: memref<1x8xf32, #tpu.memory_space<vmem>>, %arg6: memref<8x8xf32, #tpu.memory_space<vmem>>) attributes {dimension_semantics = [#tpu.dimension_semantics<parallel>], iteration_bounds = array<i64: 1>, scalar_prefetch = 0 : i64, scratch_operands = 0 : i64, tpu.core_type = #tpu.core_type<tc>, window_params = [{transform_indices = @transform_0, window_bounds = array<i64: 8, 8>}, {pipeline_mode = #tpu.pipeline_mode<synchronous>, transform_indices = @transform_1, window_bounds = array<i64: 8, 64>}, {pipeline_mode = #tpu.pipeline_mode<synchronous>, transform_indices = @transform_2, window_bounds = array<i64: 1, 64>}, {pipeline_mode = #tpu.pipeline_mode<synchronous>, transform_indices = @transform_3, window_bounds = array<i64: 64, 8>}, {pipeline_mode = #tpu.pipeline_mode<synchronous>, transform_indices = @transform_4, window_bounds = array<i64: 1, 8>}, {transform_indices = @transform_5, window_bounds = array<i64: 8, 8>}]} {
    %c0 = arith.constant 0 : index
    %c0_0 = arith.constant 0 : index
    %0 = vector.load %arg1[%c0, %c0_0] : memref<8x8xf32, #tpu.memory_space<vmem>>, vector<8x8xf32>
    %c0_1 = arith.constant 0 : index
    %c0_2 = arith.constant 0 : index
    %1 = vector.load %arg2[%c0_1, %c0_2] : memref<8x64xf32, #tpu.memory_space<vmem>>, vector<8x64xf32>
    %cst = arith.constant dense<0.000000e+00> : vector<8x64xf32>
    %2 = tpu.matmul %0, %1, %cst {dimension_numbers = #tpu.dot_dimension_numbers<[1], [0], [0], [1], [0, 0, 1, 1], [], []>} : vector<8x8xf32>, vector<8x64xf32>, vector<8x64xf32> -> vector<8x64xf32>
    %c0_3 = arith.constant 0 : index
    %c0_4 = arith.constant 0 : index
    %3 = vector.load %arg3[%c0_3, %c0_4] : memref<1x64xf32, #tpu.memory_space<vmem>>, vector<1x64xf32>
    %4 = vector.broadcast %3 : vector<1x64xf32> to vector<8x64xf32>
    %5 = arith.addf %2, %4 : vector<8x64xf32>
    %6 = math.tanh %5 : vector<8x64xf32>
    %c0_5 = arith.constant 0 : index
    %c0_6 = arith.constant 0 : index
    %7 = vector.load %arg4[%c0_5, %c0_6] : memref<64x8xf32, #tpu.memory_space<vmem>>, vector<64x8xf32>
    %cst_7 = arith.constant dense<0.000000e+00> : vector<8x8xf32>
    %8 = tpu.matmul %6, %7, %cst_7 {dimension_numbers = #tpu.dot_dimension_numbers<[1], [0], [0], [1], [0, 0, 1, 1], [], []>} : vector<8x64xf32>, vector<64x8xf32>, vector<8x8xf32> -> vector<8x8xf32>
    %c0_8 = arith.constant 0 : index
    %c0_9 = arith.constant 0 : index
    %9 = vector.load %arg5[%c0_8, %c0_9] : memref<1x8xf32, #tpu.memory_space<vmem>>, vector<1x8xf32>
    %10 = vector.broadcast %9 : vector<1x8xf32> to vector<8x8xf32>
    %11 = arith.addf %8, %10 : vector<8x8xf32>
    %12 = arith.negf %11 : vector<8x8xf32>
    %13 = math.exp %12 : vector<8x8xf32>
    %cst_10 = arith.constant 1.000000e+00 : f32
    %14 = vector.broadcast %cst_10 : f32 to vector<8x8xf32>
    %15 = arith.addf %14, %13 : vector<8x8xf32>
    %16 = arith.divf %14, %15 : vector<8x8xf32>
    %c0_11 = arith.constant 0 : index
    %c0_12 = arith.constant 0 : index
    %17 = vector.load %arg6[%c0_11, %c0_12] : memref<8x8xf32, #tpu.memory_space<vmem>>, vector<8x8xf32>
    tpu.vector_store %arg6[%c0_11, %c0_12], %16 {strides = array<i32>} : memref<8x8xf32, #tpu.memory_space<vmem>>, vector<8x8xf32>,
    return
  }
  func.func @transform_0(%arg0: i32) -> (i32, i32) {
    %c0_i32 = arith.constant 0 : i32
    %c0_i32_0 = arith.constant 0 : i32
    return %arg0, %c0_i32 : i32, i32
  }
  func.func @transform_1(%arg0: i32) -> (i32, i32) {
    %c0_i32 = arith.constant 0 : i32
    %c0_i32_0 = arith.constant 0 : i32
    %c0_i32_1 = arith.constant 0 : i32
    return %c0_i32, %c0_i32_0 : i32, i32
  }
  func.func @transform_2(%arg0: i32) -> (i32, i32) {
    %c0_i32 = arith.constant 0 : i32
    %c0_i32_0 = arith.constant 0 : i32
    %c0_i32_1 = arith.constant 0 : i32
    return %c0_i32, %c0_i32_0 : i32, i32
  }
  func.func @transform_3(%arg0: i32) -> (i32, i32) {
    %c0_i32 = arith.constant 0 : i32
    %c0_i32_0 = arith.constant 0 : i32
    %c0_i32_1 = arith.constant 0 : i32
    return %c0_i32, %c0_i32_0 : i32, i32
  }
  func.func @transform_4(%arg0: i32) -> (i32, i32) {
    %c0_i32 = arith.constant 0 : i32
    %c0_i32_0 = arith.constant 0 : i32
    %c0_i32_1 = arith.constant 0 : i32
    return %c0_i32, %c0_i32_0 : i32, i32
  }
  func.func @transform_5(%arg0: i32) -> (i32, i32) {
    %c0_i32 = arith.constant 0 : i32
    %c0_i32_0 = arith.constant 0 : i32
    return %arg0, %c0_i32 : i32, i32
  }
}

</mosaic_0001>

<llo_original>
// kernel: tpu_custom_call.1
$region0: #{tpu_custom_call.1}
  #allocation0 [shape = 'u32[]', space=smem, size = 0x4, offset = 0x4, fixed_abs, tag = 'smem constant byte address 0x4 - core index']
  #allocation1 [shape = 'u32[72,128]{1,0:T(1,128)}', space=vmem, size = 0x9000, scoped, tag = 'internal scratch']
  %s0 = inlined_call_operand.vmem [shape: f32[8,8], index: 0, kind: input, shape index: {}]
  %s1 = inlined_call_operand.vmem [shape: f32[8,64], index: 1, kind: input, shape index: {}]
  %s2 = inlined_call_operand.vmem [shape: f32[1,64], index: 2, kind: input, shape index: {}]
  %s3 = inlined_call_operand.vmem [shape: f32[64,8], index: 3, kind: input, shape index: {}]
  %s4 = inlined_call_operand.vmem [shape: f32[1,8], index: 4, kind: input, shape index: {}]
  %s5 = inlined_call_operand.hbm [shape: f32[8,8], index: 5, kind: output, shape index: {}]
  %s6 = sld [smem:[#allocation0]]
  $region30: #{tpu_custom_call.1} parent=0
    _
  %s8 = ssub.s32 1, %s6
  %s9 = scalar_select 0, %s8, %s6
  $region1: #{tpu_custom_call.1} parent=0
    #allocation2 [shape = 'u8[4096]{0}', space=vmem, size = 0x1000, scoped, tag = 'output window, operand 0, single buffered']
    #allocation3 [shape = 's32[1]{0}', space=sflag, size = 0x4, scoped, tag = 'scoped memory for tpu_custom_call.1']
    %10 = vsyncpa [#allocation3], 0
    // Predicated region
    $region2: #{tpu_custom_call.1} parent=1 // pred_check
      _
    $region3: #{tpu_custom_call.1} parent=1 // pred_check_branch
      %12 = sbr.rel (0) target = $region5
    $region4: #{tpu_custom_call.1} parent=1 // pred_region
      _
    $region5: #{tpu_custom_call.1} parent=1 // pred_fallthru
      _
    // Predicated region
    $region6: #{tpu_custom_call.1} parent=1 // pred_check
      _
    $region7: #{tpu_custom_call.1} parent=1 // pred_check_branch
      %14 = sbr.rel (0) target = $region9
    $region8: #{tpu_custom_call.1} parent=1 // pred_region
      _
    $region9: #{tpu_custom_call.1} parent=1 // pred_fallthru
      _
    // Predicated region
    $region10: #{tpu_custom_call.1} parent=1 // pred_check
      _
    $region11: #{tpu_custom_call.1} parent=1 // pred_check_branch
      %16 = sbr.rel (0) target = $region13
    $region12: #{tpu_custom_call.1} parent=1 // pred_region
      _
    $region13: #{tpu_custom_call.1} parent=1 // pred_fallthru
      _
    // Predicated region
    $region14: #{tpu_custom_call.1} parent=1 // pred_check
      _
    $region15: #{tpu_custom_call.1} parent=1 // pred_check_branch
      %18 = sbr.rel (0) target = $region17
    $region16: #{tpu_custom_call.1} parent=1 // pred_region
      _
    $region17: #{tpu_custom_call.1} parent=1 // pred_fallthru
      _
    // Predicated region
    $region18: #{tpu_custom_call.1} parent=1 // pred_check
      _
    $region19: #{tpu_custom_call.1} parent=1 // pred_check_branch
      %20 = sbr.rel (0) target = $region21
    $region20: #{tpu_custom_call.1} parent=1 // pred_region
      _
    $region21: #{tpu_custom_call.1} parent=1 // pred_fallthru
      _
    %v21 = vld [vmem:[%s0] sm:$0xff]
    %v22 = vld [vmem:[%s1] sm:$0xff]
    %v23 = vld [vmem:[%s2] sm:$0x1]
    %v25 = vperm.slane %v23, 0
    %vm27 = vcmask 64512
    %v29 = vsel %vm27, %v21, 0
    %31 = vmatpush.msra.mxu0 0.0
    %32 = vmatpush.msra.mxu0 0.0
    %33 = vmatpush.msra.mxu0 0.0
    %34 = vmatpush.msra.mxu0 0.0
    %35 = vmatpush.msra.mxu0 0.0
    %36 = vmatpush.msra.mxu0 0.0
    %37 = vmatpush.msra.mxu0 0.0
    %38 = vmatpush.msra.mxu0 0.0
    %39 = vmatpush.msra.mxu0 0.0
    %40 = vmatpush.msra.mxu0 0.0
    %41 = vmatpush.msra.mxu0 0.0
    %42 = vmatpush.msra.mxu0 0.0
    %43 = vmatpush.msra.mxu0 0.0
    %44 = vmatpush.msra.mxu0 0.0
    %45 = vmatpush.msra.mxu0 0.0
    %46 = vmatpush.msra.mxu0 %v22
    %47 = vmatmul.f32.gmra.mxu0 %v29
    %v48 = vpop.f32.mrf.mxu0
    %v49 = vadd.f32 %v25, %v48
    %50 = vdwg.mxu0
    %v51 = vtanh.pop %v49
    %v52 = vld [vmem:[%s3] sm:$0xff]
    %v53 = vld [vmem:[%s3 + $0x8] sm:$0xff]
    %v54 = vld [vmem:[%s3 + $0x10] sm:$0xff]
    %v55 = vld [vmem:[%s3 + $0x18] sm:$0xff]
    %v56 = vld [vmem:[%s3 + $0x20] sm:$0xff]
    %v57 = vld [vmem:[%s3 + $0x28] sm:$0xff]
    %v58 = vld [vmem:[%s3 + $0x30] sm:$0xff]
    %v59 = vld [vmem:[%s3 + $0x38] sm:$0xff]
    %v60 = vld [vmem:[%s4] sm:$0x1]
    %v62 = vperm.slane %v60, 0
    %vm64 = vcmask 523264
    %v66 = vsel %vm64, %v51, 0
    %68 = vmatpush.msra.mxu0 0.0
    %69 = vmatpush.msra.mxu0 0.0
    %70 = vmatpush.msra.mxu0 0.0
    %71 = vmatpush.msra.mxu0 0.0
    %72 = vmatpush.msra.mxu0 0.0
    %73 = vmatpush.msra.mxu0 0.0
    %74 = vmatpush.msra.mxu0 0.0
    %75 = vmatpush.msra.mxu0 0.0
    %76 = vmatpush.msra.mxu0 %v59
    %77 = vmatpush.msra.mxu0 %v58
    %78 = vmatpush.msra.mxu0 %v57
    %79 = vmatpush.msra.mxu0 %v56
    %80 = vmatpush.msra.mxu0 %v55
    %81 = vmatpush.msra.mxu0 %v54
    %82 = vmatpush.msra.mxu0 %v53
    %83 = vmatpush.msra.mxu0 %v52
    %84 = vmatmul.f32.gmra.mxu0 %v66
    %v85 = vpop.f32.mrf.mxu0
    %v86 = vadd.f32 %v62, %v85
    %87 = vdwg.mxu0
    %v88 = vxor.u32 %v86, 2147483648
    %v89 = vmul.f32 %v88, 1.442695
    %v90 = vpow.pop %v89
    %v91 = vadd.f32 %v90, 1.0
    %v92 = vrcp.pop %v91
    %v93 = vmul.f32 %v91, %v92
    %v94 = vsub.f32 1.0, %v93
    %v95 = vmul.f32 %v92, %v94
    %v96 = vadd.f32 %v92, %v95
    %vm97 = vweird.f32 %v91
    %vm98 = vweird.f32 %v92
    %vm99 = vmor %vm97, %vm98
    %v100 = vsel %vm99, %v92, %v96
    %v101 = vand.u32 2147483647, %v91
    %vm102 = vcmp.eq.f32.partialorder %v101, 8.507059e+37
    %v103 = vand.u32 %v91, 2147483648
    %v104 = vor.u32 1.1754944e-38, %v103
    %v105 = vsel %vm102, %v104, %v100
    %v106 = vmul.f32 1.0, %v105
    %107 = vst.msk [vmem:[#allocation2] sm:$0xff] %vm27, %v106
    // Predicated region
    $region22: #{tpu_custom_call.1} parent=1 // pred_check
      _
    $region23: #{tpu_custom_call.1} parent=1 // pred_check_branch
      %109 = sbr.rel (0) target = $region25
    $region24: #{tpu_custom_call.1} parent=1 // pred_region
      %111 = vsyncadd [#allocation3], 0
      %s113 = sshll.u32 [#allocation2], 4
      %s114 = int_to_ptr.vmem [resolvable:$true] %s113
      %s115 = sshll.u32 %s5, 4
      %s116 = int_to_ptr.hbm [resolvable:$true] %s115
      %118 = dma.vmem_to_hbm [thread:$0]  %s114, 128, %s116, [#allocation3]
    $region25: #{tpu_custom_call.1} parent=1 // pred_fallthru
      _
    // Predicated region
    $region26: #{tpu_custom_call.1} parent=1 // pred_check
      _
    $region27: #{tpu_custom_call.1} parent=1 // pred_check_branch
      %120 = sbr.rel (0) target = $region29
    $region28: #{tpu_custom_call.1} parent=1 // pred_region
      %122 = dma.done [#allocation3], 128
    $region29: #{tpu_custom_call.1} parent=1 // pred_fallthru
      _
    %123 = vsyncpa [#allocation3], 1

</llo_original>
